<compile_context>
chip_gen: v5e
topology: v5e:2x2
jax: 0.10.0
libtpu: 0.0.40
codegen_flags: <defaults>
</compile_context>

<pallas_src>
import functools

import jax
import jax.numpy as jnp
from jax.experimental import pallas as pl
from jax.experimental.pallas import tpu as pltpu


# ----------------------------------------------------------------------------
# Tiling / VMEM budgeting helpers.
# ----------------------------------------------------------------------------
def _round_up(v, m):
    return (v + m - 1) // m * m


def _divisors(n):
    return [d for d in range(1, n + 1) if n % d == 0]


@functools.lru_cache(maxsize=1)
def _vmem_limit_bytes():
    """Generation-aware scoped-VMEM request (v7x: 64 MiB/TC, v5e/v6e: 128 MiB)."""
    cap = 64 * 1024 * 1024                      # conservative default (v7x/TC)
    try:
        cap = int(pltpu.get_tpu_info().vmem_capacity_bytes)
    except Exception:
        pass
    return min(int(cap * 0.85), 100 * 1024 * 1024)


def _footprint_bytes(Bb, TM, N, J, F_in, Fp, cs):
    """VMEM bytes for one kernel-1 grid step, incl. 2x double-buffering and a
    rough allowance for in-kernel temporaries (f32 matmul results etc.)."""
    x_blk = Bb * N * F_in * cs
    fcw = F_in * J * Fp * cs
    w2_blk = Bb * TM * N * J * cs
    y_blk = Bb * TM * Fp * 4
    stats = 2 * Fp * 4
    zz = Bb * N * J * Fp * cs                   # scratch (single-buffered)
    tmp = (Bb * N * J * Fp * 4                  # f32 zz before the cast
           + Bb * F_in * J * Fp * cs            # broadcast fc weight
           + 2 * Bb * TM * Fp * 4)              # y / centred-diff temporaries
    return 2 * (x_blk + fcw + w2_blk + y_blk + stats) + zz + tmp


def _choose_tiles(B, N, J, F_in, Fp, cs, budget, max_rows=512):
    """Pick (batch block Bb, row tile TM) against the VMEM budget."""
    # Row tile: divisor of N, multiple of 8 (or full N), as large as possible
    # while a Bb=1 block fits the budget (decouples footprint from N^2).
    cands = [d for d in _divisors(N) if d % 8 == 0 and d <= max_rows]
    if not cands:
        cands = [N]   # TODO(synk): pad N for huge graphs with awkward sizes
    TM = cands[0]
    for t in cands:
        if _footprint_bytes(1, t, N, J, F_in, Fp, cs) <= budget:
            TM = max(TM, t)

    # Batch block: largest divisor of B fitting the budget.
    divs = _divisors(B)
    Bb = 1
    for d in divs:
        if _footprint_bytes(d, TM, N, J, F_in, Fp, cs) <= budget:
            Bb = d
    # v7x megacore: keep >= 2 batch grid steps (ideally an even number) so the
    # "parallel" batch axis feeds both TensorCores.
    if B >= 2:
        while B // Bb < 2 and Bb > 1:
            Bb = max(d for d in divs if d < Bb)
        if (B // Bb) % 2 == 1:
            smaller = [d for d in divs if d < Bb and (B // d) % 2 == 0]
            if smaller:
                Bb = max(smaller)
    return Bb, TM


# ----------------------------------------------------------------------------
# Kernel 1: fused gmul + fc (one tall contraction) + BN partial statistics.
#   grid = (batch_blocks, row_tiles); zz is built once per batch block.
# ----------------------------------------------------------------------------
def _gconv_kernel(*refs, bn_stats):
    if bn_stats:
        x_ref, fcw_ref, w2_ref, y_ref, stats_ref, zz_ref = refs
    else:
        x_ref, fcw_ref, bias_ref, w2_ref, y_ref, zz_ref = refs

    r = pl.program_id(1)

    # Build zz for this batch block at its first row tile and keep it resident
    # in the VMEM scratch for all remaining row tiles:
    #   zz[b, m*J + j, o] = sum_f x[b, m, f] * fc_w[o, j*F_in + f]
    @pl.when(r == 0)
    def _():
        bb = x_ref.shape[0]
        fcw = jnp.broadcast_to(fcw_ref[...], (bb,) + fcw_ref.shape)
        z = jnp.einsum("bmf,bfk->bmk", x_ref[...], fcw,
                       preferred_element_type=jnp.float32)       # (Bb, N, J*Fp)
        # (Bb, N, J*Fp) -> (Bb, N*J, Fp): same row-major order (j minor), so it
        # matches W2 = W.reshape(B, N, N*J) and the whole gmul+fc collapses
        # into the single contraction below.
        zz_ref[...] = z.astype(zz_ref.dtype).reshape(zz_ref.shape)

    # Fused gmul+fc: one MXU contraction of length N*J per batch element.
    y = jnp.einsum("bnk,bko->bno", w2_ref[...], zz_ref[...],
                   preferred_element_type=jnp.float32)           # (Bb, TM, Fp)

    if not bn_stats:
        y = y + bias_ref[...]                 # fc bias (only when BN is off)

    y_ref[...] = y

    if bn_stats:
        # Per-tile CENTRED partial statistics (stable Welford-style combine is
        # done once in the wrapper): row 0 = sum(y), row 1 = sum((y - mu_t)^2).
        n_t = y.shape[0] * y.shape[1]
        s1 = jnp.sum(y, axis=(0, 1))[None, :]                    # (1, Fp)
        mu = s1 * (1.0 / n_t)
        d = y - mu
        m2 = jnp.sum(d * d, axis=(0, 1))[None, :]                # (1, Fp)
        stats_ref[0, 0, 0:1, :] = s1
        stats_ref[0, 0, 1:2, :] = m2


# ----------------------------------------------------------------------------
# Kernel 2: tiled BatchNorm apply (pure y*scale + shift, in place).
# ----------------------------------------------------------------------------
def _bn_apply_kernel(y_ref, scale_ref, shift_ref, o_ref):
    o_ref[...] = y_ref[...] * scale_ref[...] + shift_ref[...]


# ----------------------------------------------------------------------------
# Wrapper.
# ----------------------------------------------------------------------------
def gconv_forward(W, x, fc_w, fc_b, gamma, beta, *, bn_bool=True,
                  compute_dtype=jnp.bfloat16, eps=1e-5):
    """Pallas implementation of Gconv.forward.

    Args:
      W:    (B, N, N, J)   -- pass already in `compute_dtype` (e.g. bf16) to
                              avoid an extra HBM pass for the cast.
      x:    (B, N, F_in)
      fc_w: (F_out, J*F_in)   nn.Linear weight layout
      fc_b: (F_out,)
      gamma, beta: (F_out,)   BatchNorm1d affine parameters
    Returns:
      (W, x_out) with x_out of shape (B, N, F_out), float32.
    """
    B, N, N2, J = W.shape
    assert N2 == N
    F_in = x.shape[-1]
    F_out = fc_w.shape[0]
    assert fc_w.shape[1] == J * F_in

    cdt = jnp.dtype(compute_dtype)
    cs = cdt.itemsize
    Fp = _round_up(F_out, 128)     # lane-dense stores / full MXU output columns
    orig_W = W

    # ---- layout-only glue (cheap; the W astype is a no-op if W is already in
    #      compute_dtype, which is the recommended way to feed this kernel) ----
    W2 = W.reshape(B, N, N * J).astype(cdt)          # j-minor; FREE reshape
    xc = x.astype(cdt)
    # fcw[f, j*Fp + o] = fc_w[o, j*F_in + f], zero padded to Fp output columns.
    fcw3 = jnp.transpose(fc_w.reshape(F_out, J, F_in), (2, 1, 0))   # (F_in,J,F_out)
    if Fp != F_out:
        fcw3 = jnp.pad(fcw3, ((0, 0), (0, 0), (0, Fp - F_out)))
    fcw = fcw3.reshape(F_in, J * Fp).astype(cdt)

    limit = _vmem_limit_bytes()
    budget = int(limit * 0.85)
    Bb, TM = _choose_tiles(B, N, J, F_in, Fp, cs, budget)
    nb, nr = B // Bb, N // TM

    kernel = functools.partial(_gconv_kernel, bn_stats=bn_bool)

    in_specs = [
        pl.BlockSpec((Bb, N, F_in), lambda b, r: (b, 0, 0)),   # x (row-invariant)
        pl.BlockSpec((F_in, J * Fp), lambda b, r: (0, 0)),     # fc weight (resident)
    ]
    args = [xc, fcw]
    if not bn_bool:
        bias_p = jnp.zeros((1, Fp), jnp.float32).at[0, :F_out].set(
            fc_b.astype(jnp.float32))
        in_specs.append(pl.BlockSpec((1, Fp), lambda b, r: (0, 0)))
        args.append(bias_p)
    in_specs.append(pl.BlockSpec((Bb, TM, N * J), lambda b, r: (b, r, 0)))   # W2
    args.append(W2)

    y_spec = pl.BlockSpec((Bb, TM, Fp), lambda b, r: (b, r, 0))
    if bn_bool:
        out_shape = (jax.ShapeDtypeStruct((B, N, Fp), jnp.float32),
                     jax.ShapeDtypeStruct((nb, nr, 2, Fp), jnp.float32))
        out_specs = (y_spec,
                     pl.BlockSpec((1, 1, 2, Fp), lambda b, r: (b, r, 0, 0)))
    else:
        out_shape = jax.ShapeDtypeStruct((B, N, Fp), jnp.float32)
        out_specs = y_spec

    result = pl.pallas_call(
        kernel,
        out_shape=out_shape,
        grid=(nb, nr),
        in_specs=in_specs,
        out_specs=out_specs,
        scratch_shapes=[pltpu.VMEM((Bb, N * J, Fp), cdt)],
        compiler_params=pltpu.CompilerParams(
            dimension_semantics=("parallel", "arbitrary"),
            vmem_limit_bytes=limit),
    )(*args)

    if not bn_bool:
        return orig_W, result[..., :F_out]

    y, stats = result

    # ---- BatchNorm1d (training-mode biased batch stats), finalized ONCE -----
    # Numerically-stable parallel (Welford-style) combine of per-tile partials.
    n_tile = float(Bb * TM)
    total = float(B * N)
    s1 = stats[:, :, 0, :]                                  # (nb, nr, Fp)
    m2 = stats[:, :, 1, :]
    mean = jnp.sum(s1, axis=(0, 1)) / total                 # (Fp,)
    tile_mean = s1 / n_tile
    m2_tot = (jnp.sum(m2, axis=(0, 1))
              + n_tile * jnp.sum((tile_mean - mean) ** 2, axis=(0, 1)))
    var = jnp.maximum(m2_tot / total, 0.0)                  # biased, like torch BN
    inv = jax.lax.rsqrt(var + eps)
    gamma_p = jnp.zeros((Fp,), jnp.float32).at[:F_out].set(gamma.astype(jnp.float32))
    beta_p = jnp.zeros((Fp,), jnp.float32).at[:F_out].set(beta.astype(jnp.float32))
    scale = (gamma_p * inv).reshape(1, Fp)
    shift = (beta_p - mean * gamma_p * inv).reshape(1, Fp)

    # ---- tiled scale/shift apply, in place (y buffer donated) ---------------
    y_bn = pl.pallas_call(
        _bn_apply_kernel,
        out_shape=jax.ShapeDtypeStruct((B, N, Fp), jnp.float32),
        grid=(nb, nr),
        in_specs=[pl.BlockSpec((Bb, TM, Fp), lambda b, r: (b, r, 0)),
                  pl.BlockSpec((1, Fp), lambda b, r: (0, 0)),
                  pl.BlockSpec((1, Fp), lambda b, r: (0, 0))],
        out_specs=pl.BlockSpec((Bb, TM, Fp), lambda b, r: (b, r, 0)),
        input_output_aliases={0: 0},
        compiler_params=pltpu.CompilerParams(
            dimension_semantics=("parallel", "parallel"),
            vmem_limit_bytes=limit),
    )(y, scale, shift)

    return orig_W, y_bn[..., :F_out]


# ----------------------------------------------------------------------------
# Pure-JAX reference (mirrors the torch code) for sanity checking.
# ----------------------------------------------------------------------------
def _reference(W, x, fc_w, fc_b, gamma, beta, bn_bool=True, eps=1e-5):
    B, N, _, J = W.shape
    parts = [jnp.einsum("bnm,bmf->bnf", W[..., j], x) for j in range(J)]
    gx = jnp.concatenate(parts, axis=-1)                       # (B, N, J*F_in)
    y = gx.reshape(B * N, -1) @ fc_w.T + fc_b                  # (B*N, F_out)
    if bn_bool:
        mean = jnp.mean(y, axis=0, keepdims=True)
        var = jnp.mean((y - mean) ** 2, axis=0, keepdims=True)
        y = (y - mean) * jax.lax.rsqrt(var + eps) * gamma + beta
    return W, y.reshape(B, N, -1)


if __name__ == "__main__":
    # Small shapes consistent with the module: B graphs, N nodes, J operators.
    B, N, J = 2, 16, 2
    F_in, F_out = 8, 32

    key = jax.random.PRNGKey(0)
    k_w, k_x, k_fcw, k_fcb, k_g, k_b = jax.random.split(key, 6)

    W = jax.random.normal(k_w, (B, N, N, J), dtype=jnp.float32)
    x = jax.random.normal(k_x, (B, N, F_in), dtype=jnp.float32)
    fc_w = 0.1 * jax.random.normal(k_fcw, (F_out, J * F_in), dtype=jnp.float32)
    fc_b = 0.1 * jax.random.normal(k_fcb, (F_out,), dtype=jnp.float32)
    gamma = 1.0 + 0.1 * jax.random.normal(k_g, (F_out,), dtype=jnp.float32)
    beta = 0.1 * jax.random.normal(k_b, (F_out,), dtype=jnp.float32)

    _, ref_bn = _reference(W, x, fc_w, fc_b, gamma, beta, bn_bool=True)
    _, ref_nb = _reference(W, x, fc_w, fc_b, gamma, beta, bn_bool=False)

    # f32 path: exact check of the fused-contraction algebra + BN statistics.
    _, out_bn32 = gconv_forward(W, x, fc_w, fc_b, gamma, beta,
                                bn_bool=True, compute_dtype=jnp.float32)
    jax.block_until_ready(out_bn32)
    assert out_bn32.shape == (B, N, F_out)
    assert jnp.allclose(out_bn32, ref_bn, atol=1e-4, rtol=1e-4)

    # No-BN path (exercises the in-kernel fc bias).
    _, out_nb32 = gconv_forward(W, x, fc_w, fc_b, gamma, beta,
                                bn_bool=False, compute_dtype=jnp.float32)
    jax.block_until_ready(out_nb32)
    assert jnp.allclose(out_nb32, ref_nb, atol=1e-4, rtol=1e-4)

    # bf16 fast path (W pre-cast once, as its producer would supply it).
    W_bf16 = W.astype(jnp.bfloat16)
    _, out_bn16 = gconv_forward(W_bf16, x, fc_w, fc_b, gamma, beta,
                                bn_bool=True, compute_dtype=jnp.bfloat16)
    jax.block_until_ready(out_bn16)
    assert out_bn16.shape == (B, N, F_out)
    assert jnp.allclose(out_bn16, ref_bn, atol=7.5e-2, rtol=5e-2)

    print("KERNEL_OK")
</pallas_src>

<mosaic_0001>
module attributes {stable_mosaic.version = 11 : i64} {
  func.func @_gconv_kernel(%arg0: i32, %arg1: i32, %arg2: memref<1x16x8xf32, #tpu.memory_space<vmem>>, %arg3: memref<8x256xf32, #tpu.memory_space<vmem>>, %arg4: memref<1x16x32xf32, #tpu.memory_space<vmem>>, %arg5: memref<1x16x128xf32, #tpu.memory_space<vmem>>, %arg6: memref<1x1x2x128xf32, #tpu.memory_space<vmem>>, %arg7: memref<1x32x128xf32, #tpu.memory_space<vmem>>) attributes {dimension_semantics = [#tpu.dimension_semantics<parallel>, #tpu.dimension_semantics<arbitrary>], iteration_bounds = array<i64: 2, 1>, scalar_prefetch = 0 : i64, scratch_operands = 1 : i64, tpu.core_type = #tpu.core_type<tc>, window_params = [{transform_indices = @transform_0, window_bounds = array<i64: 1, 16, 8>}, {pipeline_mode = #tpu.pipeline_mode<synchronous>, transform_indices = @transform_1, window_bounds = array<i64: 8, 256>}, {transform_indices = @transform_2, window_bounds = array<i64: 1, 16, 32>}, {transform_indices = @transform_3, window_bounds = array<i64: 1, 16, 128>}, {transform_indices = @transform_4, window_bounds = array<i64: 1, 1, 2, 128>}]} {
    %c0_i32 = arith.constant 0 : i32
    %0 = arith.cmpi eq, %arg1, %c0_i32 : i32
    %1 = arith.extui %0 : i1 to i32
    %c0_i32_0 = arith.constant 0 : i32
    %2 = arith.cmpi ne, %1, %c0_i32_0 : i32
    scf.if %2 {
      %c0_19 = arith.constant 0 : index
      %c0_20 = arith.constant 0 : index
      %23 = vector.load %arg3[%c0_19, %c0_20] : memref<8x256xf32, #tpu.memory_space<vmem>>, vector<8x256xf32>
      %24 = vector.shape_cast %23 : vector<8x256xf32> to vector<1x8x256xf32>
      %c0_21 = arith.constant 0 : index
      %c0_22 = arith.constant 0 : index
      %c0_23 = arith.constant 0 : index
      %25 = vector.load %arg2[%c0_21, %c0_22, %c0_23] : memref<1x16x8xf32, #tpu.memory_space<vmem>>, vector<1x16x8xf32>
      "tpu.trace_start"() <{level = 10 : i32, message = "bmf,bfk->bmk"}> : () -> ()
      %cst_24 = arith.constant dense<0.000000e+00> : vector<1x16x256xf32>
      %26 = tpu.matmul %25, %24, %cst_24 {dimension_numbers = #tpu.dot_dimension_numbers<[2], [1], [1], [2], [0, 0, 0, 1, 1, 2], [0], [0]>} : vector<1x16x8xf32>, vector<1x8x256xf32>, vector<1x16x256xf32> -> vector<1x16x256xf32>
      "tpu.trace_stop"() : () -> ()
      %27 = vector.shape_cast %26 : vector<1x16x256xf32> to vector<1x32x128xf32>
      %c0_25 = arith.constant 0 : index
      %c0_26 = arith.constant 0 : index
      %c0_27 = arith.constant 0 : index
      %28 = vector.load %arg7[%c0_25, %c0_26, %c0_27] : memref<1x32x128xf32, #tpu.memory_space<vmem>>, vector<1x32x128xf32>
      tpu.vector_store %arg7[%c0_25, %c0_26, %c0_27], %27 {strides = array<i32>} : memref<1x32x128xf32, #tpu.memory_space<vmem>>, vector<1x32x128xf32>,
    } else {
    }
    %c0 = arith.constant 0 : index
    %c0_1 = arith.constant 0 : index
    %c0_2 = arith.constant 0 : index
    %3 = vector.load %arg4[%c0, %c0_1, %c0_2] : memref<1x16x32xf32, #tpu.memory_space<vmem>>, vector<1x16x32xf32>
    %c0_3 = arith.constant 0 : index
    %c0_4 = arith.constant 0 : index
    %c0_5 = arith.constant 0 : index
    %4 = vector.load %arg7[%c0_3, %c0_4, %c0_5] : memref<1x32x128xf32, #tpu.memory_space<vmem>>, vector<1x32x128xf32>
    "tpu.trace_start"() <{level = 10 : i32, message = "bnk,bko->bno"}> : () -> ()
    %cst = arith.constant dense<0.000000e+00> : vector<1x16x128xf32>
    %5 = tpu.matmul %3, %4, %cst {dimension_numbers = #tpu.dot_dimension_numbers<[2], [1], [1], [2], [0, 0, 0, 1, 1, 2], [0], [0]>} : vector<1x16x32xf32>, vector<1x32x128xf32>, vector<1x16x128xf32> -> vector<1x16x128xf32>
    "tpu.trace_stop"() : () -> ()
    %c0_6 = arith.constant 0 : index
    %c0_7 = arith.constant 0 : index
    %c0_8 = arith.constant 0 : index
    %6 = vector.load %arg5[%c0_6, %c0_7, %c0_8] : memref<1x16x128xf32, #tpu.memory_space<vmem>>, vector<1x16x128xf32>
    tpu.vector_store %arg5[%c0_6, %c0_7, %c0_8], %5 {strides = array<i32>} : memref<1x16x128xf32, #tpu.memory_space<vmem>>, vector<1x16x128xf32>,
    %cst_9 = arith.constant dense<0.000000e+00> : vector<128xf32>
    %7 = vector.multi_reduction <add>, %5, %cst_9 [0, 1] : vector<1x16x128xf32> to vector<128xf32>
    %8 = vector.shape_cast %7 : vector<128xf32> to vector<1x128xf32>
    %cst_10 = arith.constant 6.250000e-02 : f32
    %9 = vector.broadcast %cst_10 : f32 to vector<1x128xf32>
    %10 = arith.mulf %8, %9 : vector<1x128xf32>
    %11 = vector.shape_cast %10 : vector<1x128xf32> to vector<1x1x128xf32>
    %12 = vector.broadcast %11 : vector<1x1x128xf32> to vector<1x16x128xf32>
    %13 = arith.subf %5, %12 : vector<1x16x128xf32>
    %14 = arith.mulf %13, %13 : vector<1x16x128xf32>
    %cst_11 = arith.constant dense<0.000000e+00> : vector<128xf32>
    %15 = vector.multi_reduction <add>, %14, %cst_11 [0, 1] : vector<1x16x128xf32> to vector<128xf32>
    %16 = vector.shape_cast %15 : vector<128xf32> to vector<1x128xf32>
    %c0_12 = arith.constant 0 : index
    %c0_13 = arith.constant 0 : index
    %c0_14 = arith.constant 0 : index
    %c0_15 = arith.constant 0 : index
    %17 = vector.load %arg6[%c0_12, %c0_13, %c0_14, %c0_15] : memref<1x1x2x128xf32, #tpu.memory_space<vmem>>, vector<1x1x1x128xf32>
    %18 = vector.shape_cast %17 : vector<1x1x1x128xf32> to vector<1x128xf32>
    %19 = vector.shape_cast %8 : vector<1x128xf32> to vector<1x1x1x128xf32>
    tpu.vector_store %arg6[%c0_12, %c0_13, %c0_14, %c0_15], %19 {strides = array<i32>} : memref<1x1x2x128xf32, #tpu.memory_space<vmem>>, vector<1x1x1x128xf32>,
    %c0_16 = arith.constant 0 : index
    %c0_17 = arith.constant 0 : index
    %c1 = arith.constant 1 : index
    %c0_18 = arith.constant 0 : index
    %20 = vector.load %arg6[%c0_16, %c0_17, %c1, %c0_18] : memref<1x1x2x128xf32, #tpu.memory_space<vmem>>, vector<1x1x1x128xf32>
    %21 = vector.shape_cast %20 : vector<1x1x1x128xf32> to vector<1x128xf32>
    %22 = vector.shape_cast %16 : vector<1x128xf32> to vector<1x1x1x128xf32>
    tpu.vector_store %arg6[%c0_16, %c0_17, %c1, %c0_18], %22 {strides = array<i32>} : memref<1x1x2x128xf32, #tpu.memory_space<vmem>>, vector<1x1x1x128xf32>,
    return
  }
  func.func @transform_0(%arg0: i32, %arg1: i32) -> (i32, i32, i32) {
    %c0_i32 = arith.constant 0 : i32
    %c0_i32_0 = arith.constant 0 : i32
    %c0_i32_1 = arith.constant 0 : i32
    return %arg0, %c0_i32, %c0_i32_0 : i32, i32, i32
  }
  func.func @transform_1(%arg0: i32, %arg1: i32) -> (i32, i32) {
    %c0_i32 = arith.constant 0 : i32
    %c0_i32_0 = arith.constant 0 : i32
    %c0_i32_1 = arith.constant 0 : i32
    return %c0_i32, %c0_i32_0 : i32, i32
  }
  func.func @transform_2(%arg0: i32, %arg1: i32) -> (i32, i32, i32) {
    %c0_i32 = arith.constant 0 : i32
    %c0_i32_0 = arith.constant 0 : i32
    return %arg0, %arg1, %c0_i32 : i32, i32, i32
  }
  func.func @transform_3(%arg0: i32, %arg1: i32) -> (i32, i32, i32) {
    %c0_i32 = arith.constant 0 : i32
    %c0_i32_0 = arith.constant 0 : i32
    return %arg0, %arg1, %c0_i32 : i32, i32, i32
  }
  func.func @transform_4(%arg0: i32, %arg1: i32) -> (i32, i32, i32, i32) {
    %c0_i32 = arith.constant 0 : i32
    %c0_i32_0 = arith.constant 0 : i32
    %c0_i32_1 = arith.constant 0 : i32
    return %arg0, %arg1, %c0_i32, %c0_i32_0 : i32, i32, i32, i32
  }
}

</mosaic_0001>

<llo_original>
// kernel: tpu_custom_call.1
$region0: #{tpu_custom_call.1}
  #allocation0 [shape = 'u32[]', space=smem, size = 0x4, offset = 0x4, fixed_abs, tag = 'smem constant byte address 0x4 - core index']
  #allocation1 [shape = 'u32[72,128]{1,0:T(1,128)}', space=vmem, size = 0x9000, scoped, tag = 'internal scratch']
  #allocation2 [shape = 'f32[1,32,128]{2,1,0:T(8,128)}', space=vmem, size = 0x4000, scoped, tag = 'scratch operand']
  %s0 = inlined_call_operand.vmem [shape: f32[2,16,8], index: 0, kind: input, shape index: {}]
  %s1 = inlined_call_operand.vmem [shape: f32[8,256], index: 1, kind: input, shape index: {}]
  %s2 = inlined_call_operand.vmem [shape: f32[2,16,32], index: 2, kind: input, shape index: {}]
  %s3 = inlined_call_operand.hbm [shape: f32[2,16,128], index: 3, kind: output, shape index: {0}]
  %s4 = inlined_call_operand.hbm [shape: f32[2,1,2,128], index: 4, kind: output, shape index: {1}]
  %5 = xla_tuple %s3, %s4
  %s6 = sld [smem:[#allocation0]]
  $region57: #{tpu_custom_call.1} parent=0
    _
  %s8 = ssub.s32 1, %s6
  %s9 = scalar_select 0, %s8, %s6
  $region1: #{tpu_custom_call.1} parent=0
    #allocation3 [shape = 'u8[16384]{0}', space=vmem, size = 0x4000, scoped, tag = 'output window, operand 0']
    #allocation4 [shape = 's32[2]{0}', space=sflag, size = 0x8, scoped, tag = 'scoped memory for tpu_custom_call.1']
    #allocation5 [shape = 'u8[2048]{0}', space=vmem, size = 0x800, scoped, tag = 'output window, operand 1']
    #allocation6 [shape = 's32[2]{0}', space=sflag, size = 0x8, scoped, tag = 'scoped memory for tpu_custom_call.1']
    %10 = vsyncpa [#allocation4], 0
    %s11 = scalar_lea.sflag [#allocation4], 1
    %12 = vsyncpa %s11, 0
    %13 = vsyncpa [#allocation6], 0
    %s14 = scalar_lea.sflag [#allocation6], 1
    %15 = vsyncpa %s14, 0
    loop: start=0, step=1, limit=4
    $region2: #{tpu_custom_call.1} parent=1 // loop_pre_header
      _
    $region3: #{tpu_custom_call.1} parent=1 // loop_header
      %s17 = sphi 0, %s21
      %p18 = scmp.ge.s32.totalorder %s17, 4
      %s24 = sphi 0, %s36
      %s25 = sphi 0, %s32
      %s26 = sphi 0, %s24
      %s27 = sphi 0, %s25
      %s28 = sphi 0, %s26
      %s29 = sphi 0, %s27
      %s39 = sphi 0, %s41
      %s42 = sphi 0, %s39
      %s43 = sphi 0, %s42
      %s59 = sphi 0, %s43
      %s63 = sphi 0, %s63
      %s65 = sphi 0, %s63
      %s66 = sphi 0, %s65
      %s80 = sphi 0, %s66
      %s88 = sphi 0, %s90
      %s91 = sphi 0, %s88
      %s92 = sphi 0, %s91
      %s108 = sphi 0, %s92
      %s116 = sphi 0, %s118
      %s119 = sphi 0, %s116
      %s120 = sphi 0, %s119
      %s136 = sphi 0, %s120
      %s144 = sphi 0, %s146
      %s147 = sphi 0, %s144
      %s148 = sphi 0, %s147
      %s164 = sphi 0, %s148
    $region4: #{tpu_custom_call.1} parent=1 // loop_header_branch
      %20 = sbr.rel (%p18) target = $region8
    $region5: #{tpu_custom_call.1} parent=1 // loop_body
      %s22 = ssub.s32 %s17, 1
      %s23 = ssub.s32 %s17, 2
      %s30 = sadd.s32 1, %s25
      %p31 = scmp.ge.s32.totalorder %s30, 1
      %s32 = scalar_select %p31, 0, %s30
      %s33 = sadd.s32 1, %s24
      %s34 = scalar_select %p31, %s33, %s24
      %p35 = scmp.ge.s32.totalorder %s34, 2
      %s36 = scalar_select %p35, 0, %s34
      %s37 = ssub.s32 %s24, %s36
      %p38 = scmp.eq.s32.totalorder %s37, 0
      %s40 = sadd.s32 %s39, 1
      %s41 = scalar_select %p38, %s39, %s40
      %p44 = pneg %p38
      %p45 = scmp.eq.s32.totalorder %s17, 1
      %p46 = por %p44, %p45
      %p47 = scmp.ne.s32.totalorder %s39, %s42
      %p48 = scmp.eq.s32.totalorder %s17, 0
      %p49 = por %p47, %p48
      %p50 = scmp.ne.s32.totalorder %s39, %s42
      %p51 = scmp.eq.s32.totalorder %s22, 1
      %p52 = por %p50, %p51
      %p53 = scmp.ne.s32.totalorder %s42, %s43
      %p54 = scmp.eq.s32.totalorder %s22, 0
      %p55 = por %p53, %p54
      %p56 = scmp.ne.s32.totalorder %s42, %s43
      %p57 = scmp.eq.s32.totalorder %s23, 1
      %p58 = por %p56, %p57
      %p60 = scmp.ne.s32.totalorder %s43, %s59
      %p61 = scmp.eq.s32.totalorder %s23, 0
      %p62 = por %p60, %p61
      %s64 = sadd.s32 %s63, 1
      %p67 = scmp.eq.s32.totalorder %s17, 1
      %p68 = scmp.ne.s32.totalorder %s63, %s65
      %p69 = scmp.eq.s32.totalorder %s17, 0
      %p70 = por %p68, %p69
      %p71 = scmp.ne.s32.totalorder %s63, %s65
      %p72 = scmp.eq.s32.totalorder %s22, 1
      %p73 = por %p71, %p72
      %p74 = scmp.ne.s32.totalorder %s65, %s66
      %p75 = scmp.eq.s32.totalorder %s22, 0
      %p76 = por %p74, %p75
      %p77 = scmp.ne.s32.totalorder %s65, %s66
      %p78 = scmp.eq.s32.totalorder %s23, 1
      %p79 = por %p77, %p78
      %p81 = scmp.ne.s32.totalorder %s66, %s80
      %p82 = scmp.eq.s32.totalorder %s23, 0
      %p83 = por %p81, %p82
      %s84 = ssub.s32 %s24, %s36
      %s85 = ssub.s32 %s25, %s32
      %s86 = sor.u32 %s84, %s85
      %p87 = scmp.eq.s32.totalorder %s86, 0
      %s89 = sadd.s32 %s88, 1
      %s90 = scalar_select %p87, %s88, %s89
      %p93 = pneg %p87
      %p94 = scmp.eq.s32.totalorder %s17, 1
      %p95 = por %p93, %p94
      %p96 = scmp.ne.s32.totalorder %s88, %s91
      %p97 = scmp.eq.s32.totalorder %s17, 0
      %p98 = por %p96, %p97
      %p99 = scmp.ne.s32.totalorder %s88, %s91
      %p100 = scmp.eq.s32.totalorder %s22, 1
      %p101 = por %p99, %p100
      %p102 = scmp.ne.s32.totalorder %s91, %s92
      %p103 = scmp.eq.s32.totalorder %s22, 0
      %p104 = por %p102, %p103
      %p105 = scmp.ne.s32.totalorder %s91, %s92
      %p106 = scmp.eq.s32.totalorder %s23, 1
      %p107 = por %p105, %p106
      %p109 = scmp.ne.s32.totalorder %s92, %s108
      %p110 = scmp.eq.s32.totalorder %s23, 0
      %p111 = por %p109, %p110
      %s112 = ssub.s32 %s24, %s36
      %s113 = ssub.s32 %s25, %s32
      %s114 = sor.u32 %s112, %s113
      %p115 = scmp.eq.s32.totalorder %s114, 0
      %s117 = sadd.s32 %s116, 1
      %s118 = scalar_select %p115, %s116, %s117
      %p121 = pneg %p115
      %p122 = scmp.eq.s32.totalorder %s17, 1
      %p123 = por %p121, %p122
      %p124 = scmp.ne.s32.totalorder %s116, %s119
      %p125 = scmp.eq.s32.totalorder %s17, 0
      %p126 = por %p124, %p125
      %p127 = scmp.ne.s32.totalorder %s116, %s119
      %p128 = scmp.eq.s32.totalorder %s22, 1
      %p129 = por %p127, %p128
      %p130 = scmp.ne.s32.totalorder %s119, %s120
      %p131 = scmp.eq.s32.totalorder %s22, 0
      %p132 = por %p130, %p131
      %p133 = scmp.ne.s32.totalorder %s119, %s120
      %p134 = scmp.eq.s32.totalorder %s23, 1
      %p135 = por %p133, %p134
      %p137 = scmp.ne.s32.totalorder %s120, %s136
      %p138 = scmp.eq.s32.totalorder %s23, 0
      %p139 = por %p137, %p138
      %s140 = ssub.s32 %s24, %s36
      %s141 = ssub.s32 %s25, %s32
      %s142 = sor.u32 %s140, %s141
      %p143 = scmp.eq.s32.totalorder %s142, 0
      %s145 = sadd.s32 %s144, 1
      %s146 = scalar_select %p143, %s144, %s145
      %p149 = pneg %p143
      %p150 = scmp.eq.s32.totalorder %s17, 1
      %p151 = por %p149, %p150
      %p152 = scmp.ne.s32.totalorder %s144, %s147
      %p153 = scmp.eq.s32.totalorder %s17, 0
      %p154 = por %p152, %p153
      %p155 = scmp.ne.s32.totalorder %s144, %s147
      %p156 = scmp.eq.s32.totalorder %s22, 1
      %p157 = por %p155, %p156
      %p158 = scmp.ne.s32.totalorder %s147, %s148
      %p159 = scmp.eq.s32.totalorder %s22, 0
      %p160 = por %p158, %p159
      %p161 = scmp.ne.s32.totalorder %s147, %s148
      %p162 = scmp.eq.s32.totalorder %s23, 1
      %p163 = por %p161, %p162
      %p165 = scmp.ne.s32.totalorder %s148, %s164
      %p166 = scmp.eq.s32.totalorder %s23, 0
      %p167 = por %p165, %p166
      %p168 = scmp.le.s32.totalorder 1, %s17
      %p169 = scmp.lt.s32.totalorder %s17, 3
      %p170 = pnand %p168, %p169
      %p171 = pneg %p170
      // Predicated region
      $region9: #{tpu_custom_call.1} parent=5 // pred_check
        _
      $region10: #{tpu_custom_call.1} parent=5 // pred_check_branch
        %173 = sbr.rel (%p170) target = $region12
      $region11: #{tpu_custom_call.1} parent=5 // pred_region
        %s174 = ssub.s32 %s17, 1
        // Predicated region
        $region13: #{tpu_custom_call.1} parent=11 // pred_check
          %p175 = pneg %p76
        $region14: #{tpu_custom_call.1} parent=11 // pred_check_branch
          %177 = sbr.rel (%p175) target = $region16
        $region15: #{tpu_custom_call.1} parent=11 // pred_region
          _
        $region16: #{tpu_custom_call.1} parent=11 // pred_fallthru
          _
      $region12: #{tpu_custom_call.1} parent=5 // pred_fallthru
        _
      %p178 = scmp.lt.s32.totalorder %s17, 2
      // Predicated region
      $region17: #{tpu_custom_call.1} parent=5 // pred_check
        %p179 = pneg %p178
      $region18: #{tpu_custom_call.1} parent=5 // pred_check_branch
        %181 = sbr.rel (%p179) target = $region20
      $region19: #{tpu_custom_call.1} parent=5 // pred_region
        // Predicated region
        $region21: #{tpu_custom_call.1} parent=19 // pred_check
          %p182 = pneg %p49
        $region22: #{tpu_custom_call.1} parent=19 // pred_check_branch
          %184 = sbr.rel (%p182) target = $region24
        $region23: #{tpu_custom_call.1} parent=19 // pred_region
          %p185 = scmp.lt.s32.totalorder %s24, 1
          %s186 = scalar_select %p185, %s24, 1
          %s187 = smul.addr %s186, 2
          %s188 = smul.addr %s187, 8
          %s189 = scalar_lea.vmem %s0, %s188
        $region24: #{tpu_custom_call.1} parent=19 // pred_fallthru
          _
        // Predicated region
        $region25: #{tpu_custom_call.1} parent=19 // pred_check
          %p190 = pneg %p98
        $region26: #{tpu_custom_call.1} parent=19 // pred_check_branch
          %192 = sbr.rel (%p190) target = $region28
        $region27: #{tpu_custom_call.1} parent=19 // pred_region
          %s193 = smul.u32 2, %s25
          %p194 = scmp.lt.s32.totalorder %s24, 1
          %s195 = scalar_select %p194, %s24, 1
          %p196 = scmp.lt.s32.totalorder %s193, 1
          %s197 = scalar_select %p196, %s193, 1
          %s198 = smul.addr %s195, 2
          %s199 = sadd.s32 %s197, %s198
          %s200 = smul.addr %s199, 8
          %s201 = scalar_lea.vmem %s2, %s200
          %s202 = smul.u32 2, %s25
        $region28: #{tpu_custom_call.1} parent=19 // pred_fallthru
          _
      $region20: #{tpu_custom_call.1} parent=5 // pred_fallthru
        _
      %p203 = scmp.le.s32.totalorder 1, %s17
      %p204 = scmp.lt.s32.totalorder %s17, 3
      %p205 = pnand %p203, %p204
      %p206 = pneg %p205
      // Predicated region
      $region29: #{tpu_custom_call.1} parent=5 // pred_check
        _
      $region30: #{tpu_custom_call.1} parent=5 // pred_check_branch
        %208 = sbr.rel (%p205) target = $region32
      $region31: #{tpu_custom_call.1} parent=5 // pred_region
        %s209 = ssub.s32 %s17, 1
        %p210 = scmp.lt.s32.totalorder %s26, 1
        %s211 = scalar_select %p210, %s26, 1
        %s212 = smul.addr %s211, 2
        %s213 = smul.addr %s212, 8
        %s214 = scalar_lea.vmem %s0, %s213
        %p215 = pneg %p55
        %p216 = pneg %p52
        %p217 = pneg %p76
        %p218 = pneg %p73
        %s219 = smul.u32 2, %s27
        %p220 = scmp.lt.s32.totalorder %s26, 1
        %s221 = scalar_select %p220, %s26, 1
        %p222 = scmp.lt.s32.totalorder %s219, 1
        %s223 = scalar_select %p222, %s219, 1
        %s224 = smul.addr %s221, 2
        %s225 = sadd.s32 %s223, %s224
        %s226 = smul.addr %s225, 8
        %s227 = scalar_lea.vmem %s2, %s226
        %p228 = pneg %p104
        %p229 = pneg %p101
        %p230 = pneg %p132
        %p231 = pneg %p129
        %s232 = sand.u32 %s119, 1
        %s233 = scalar_lea.sflag [#allocation4], %s232
        %s234 = sand.u32 %s119, 1
        %s235 = smul.addr %s234, 16
        %s236 = scalar_lea.vmem [#allocation3], %s235
        %p237 = pneg %p160
        %p238 = pneg %p157
        %s239 = sand.u32 %s147, 1
        %s240 = scalar_lea.sflag [#allocation6], %s239
        %s241 = sand.u32 %s147, 1
        %s242 = smul.addr %s241, 2
        %s243 = scalar_lea.vmem [#allocation5], %s242
        %p244 = scmp.lt.s32.totalorder %s26, 1
        %s245 = scalar_select %p244, %s26, 1
        %s246 = smul.addr %s245, 2
        %s247 = smul.addr %s246, 8
        %s248 = scalar_lea.vmem %s0, %s247
        %s249 = smul.u32 2, %s27
        %p250 = scmp.lt.s32.totalorder %s26, 1
        %s251 = scalar_select %p250, %s26, 1
        %p252 = scmp.lt.s32.totalorder %s249, 1
        %s253 = scalar_select %p252, %s249, 1
        %s254 = smul.addr %s251, 2
        %s255 = sadd.s32 %s253, %s254
        %s256 = smul.addr %s255, 8
        %s257 = scalar_lea.vmem %s2, %s256
        %s258 = smul.u32 2, %s27
        %s259 = smul.u32 2, %s27
        %p260 = scmp.eq.s32.totalorder %s27, 0
        // Predicated region
        $region33: #{tpu_custom_call.1} parent=31 // pred_check
          %p261 = pneg %p260
        $region34: #{tpu_custom_call.1} parent=31 // pred_check_branch
          %263 = sbr.rel (%p261) target = $region36
        $region35: #{tpu_custom_call.1} parent=31 // pred_region
          %v264 = vld [vmem:[%s1] sm:$0xff]
          %v265 = vld [vmem:[%s1 + $0x8] sm:$0xff]
          %v266 = vld [vmem:[%s248] sm:$0xff]
          %v267 = vld [vmem:[%s248 + $0x8] sm:$0xff]
          %vm268 = vcmask 64512
          %v270 = vsel %vm268, %v266, 0
          %v273 = vsel %vm268, %v267, 0
          %275 = vmatpush.msra.mxu0 0.0
          %276 = vmatpush.msra.mxu0 0.0
          %277 = vmatpush.msra.mxu0 0.0
          %278 = vmatpush.msra.mxu0 0.0
          %279 = vmatpush.msra.mxu0 0.0
          %280 = vmatpush.msra.mxu0 0.0
          %281 = vmatpush.msra.mxu0 0.0
          %282 = vmatpush.msra.mxu0 0.0
          %283 = vmatpush.msra.mxu0 0.0
          %284 = vmatpush.msra.mxu0 0.0
          %285 = vmatpush.msra.mxu0 0.0
          %286 = vmatpush.msra.mxu0 0.0
          %287 = vmatpush.msra.mxu0 0.0
          %288 = vmatpush.msra.mxu0 0.0
          %289 = vmatpush.msra.mxu0 0.0
          %290 = vmatpush.msra.mxu0 %v264
          %291 = vmatmul.f32.gmra.mxu0 %v270
          %v292 = vpop.f32.mrf.mxu0
          %v293 = vadd.f32 0.0, %v292
          %294 = vmatmul.f32.gmra.mxu0 %v273
          %v295 = vpop.f32.mrf.mxu0
          %v296 = vadd.f32 0.0, %v295
          %297 = vdwg.mxu0
          %298 = vmatpush.msra.mxu0 0.0
          %299 = vmatpush.msra.mxu0 0.0
          %300 = vmatpush.msra.mxu0 0.0
          %301 = vmatpush.msra.mxu0 0.0
          %302 = vmatpush.msra.mxu0 0.0
          %303 = vmatpush.msra.mxu0 0.0
          %304 = vmatpush.msra.mxu0 0.0
          %305 = vmatpush.msra.mxu0 0.0
          %306 = vmatpush.msra.mxu0 0.0
          %307 = vmatpush.msra.mxu0 0.0
          %308 = vmatpush.msra.mxu0 0.0
          %309 = vmatpush.msra.mxu0 0.0
          %310 = vmatpush.msra.mxu0 0.0
          %311 = vmatpush.msra.mxu0 0.0
          %312 = vmatpush.msra.mxu0 0.0
          %313 = vmatpush.msra.mxu0 %v265
          %314 = vmatmul.f32.gmra.mxu0 %v270
          %v315 = vpop.f32.mrf.mxu0
          %v316 = vadd.f32 0.0, %v315
          %317 = vmatmul.f32.gmra.mxu0 %v273
          %v318 = vpop.f32.mrf.mxu0
          %v319 = vadd.f32 0.0, %v318
          %320 = vdwg.mxu0
          %v325 = vrot.slane %v316, 4
          %v326 = vrot.slane %v319, 4
          %vm327 = vcmask 1043456
          %v328 = vsel %vm327, %v293, %v325
          %v329 = vsel %vm327, %v325, %v293
          %v330 = vrot.slane %v329, 4
          %v331 = vsel %vm327, %v296, %v326
          %v332 = vsel %vm327, %v326, %v296
          %v333 = vrot.slane %v332, 4
          %v339 = vunpack.c.l.s4 1935823168
          %v340 = vunpack.c.0.s8 %v339
          %v341 = vperm.slane %v328, %v340
          %v343 = vunpack.c.l.s4 1935823168
          %v344 = vunpack.c.0.s8 %v343
          %v345 = vperm.slane %v330, %v344
          %v347 = vunpack.c.l.s4 1935823168
          %v348 = vunpack.c.0.s8 %v347
          %v349 = vperm.slane %v331, %v348
          %v351 = vunpack.c.l.s4 1935823168
          %v352 = vunpack.c.0.s8 %v351
          %v353 = vperm.slane %v333, %v352
          %354 = vst [vmem:[#allocation2] sm:$0xff] %v341
          %355 = vst [vmem:[#allocation2 + $0x8] sm:$0xff] %v345
          %356 = vst [vmem:[#allocation2 + $0x10] sm:$0xff] %v349
          %357 = vst [vmem:[#allocation2 + $0x18] sm:$0xff] %v353
        $region36: #{tpu_custom_call.1} parent=31 // pred_fallthru
          _
        %v358 = vld [vmem:[%s257] sm:$0xff]
        %v359 = vld [vmem:[%s257 + $0x8] sm:$0xff]
        %v360 = vld [vmem:[#allocation2] sm:$0xff]
        %v361 = vld [vmem:[#allocation2 + $0x8] sm:$0xff]
        %v362 = vld [vmem:[#allocation2 + $0x10] sm:$0xff]
        %v363 = vld [vmem:[#allocation2 + $0x18] sm:$0xff]
        %vm364 = vcmask 261120
        %v366 = vsel %vm364, %v358, 0
        %v369 = vsel %vm364, %v359, 0
        %371 = vmatpush.msra.mxu0 0.0
        %372 = vmatpush.msra.mxu0 0.0
        %373 = vmatpush.msra.mxu0 0.0
        %374 = vmatpush.msra.mxu0 0.0
        %375 = vmatpush.msra.mxu0 0.0
        %376 = vmatpush.msra.mxu0 0.0
        %377 = vmatpush.msra.mxu0 0.0
        %378 = vmatpush.msra.mxu0 0.0
        %379 = vmatpush.msra.mxu0 0.0
        %380 = vmatpush.msra.mxu0 0.0
        %381 = vmatpush.msra.mxu0 0.0
        %382 = vmatpush.msra.mxu0 0.0
        %383 = vmatpush.msra.mxu0 %v363
        %384 = vmatpush.msra.mxu0 %v362
        %385 = vmatpush.msra.mxu0 %v361
        %386 = vmatpush.msra.mxu0 %v360
        %387 = vmatmul.f32.gmra.mxu0 %v366
        %v388 = vpop.f32.mrf.mxu0
        %v389 = vadd.f32 0.0, %v388
        %390 = vmatmul.f32.gmra.mxu0 %v369
        %v391 = vpop.f32.mrf.mxu0
        %v392 = vadd.f32 0.0, %v391
        %393 = vdwg.mxu0
        %394 = vst [vmem:[%s236] sm:$0xff] %v389
        %395 = vst [vmem:[%s236 + $0x8] sm:$0xff] %v392
        %v396 = vadd.f32 %v389, %v392
        %v397 = vrot.slane %v396, 4
        %v398 = vadd.f32 %v396, %v397
        %v399 = vrot.slane %v398, 2
        %v400 = vadd.f32 %v398, %v399
        %v401 = vrot.slane %v400, 1
        %v402 = vadd.f32 %v400, %v401
        %v403 = vmul.f32 %v402, 0.0625
        %v404 = vsub.f32 %v389, %v403
        %v405 = vsub.f32 %v392, %v403
        %v406 = vmul.f32 %v404, %v404
        %v407 = vmul.f32 %v405, %v405
        %v408 = vadd.f32 %v406, %v407
        %v409 = vrot.slane %v408, 4
        %v410 = vadd.f32 %v408, %v409
        %v411 = vrot.slane %v410, 2
        %v412 = vadd.f32 %v410, %v411
        %v413 = vrot.slane %v412, 1
        %v414 = vadd.f32 %v412, %v413
        %415 = vst [vmem:[%s243] sm:$0x1] %v402
        %416 = vst [vmem:[%s243 + $0x1] sm:$0x1] %v414
        %s417 = sand.u32 %s119, 1
        %s418 = scalar_lea.sflag [#allocation4], %s417
        %s419 = sand.u32 %s119, 1
        %s420 = smul.addr %s419, 16
        %s421 = scalar_lea.vmem [#allocation3], %s420
        %s422 = sand.u32 %s147, 1
        %s423 = scalar_lea.sflag [#allocation6], %s422
        %s424 = sand.u32 %s147, 1
        %s425 = smul.addr %s424, 2
        %s426 = scalar_lea.vmem [#allocation5], %s425
        // Predicated region
        $region37: #{tpu_custom_call.1} parent=31 // pred_check
          %p427 = pneg %p129
        $region38: #{tpu_custom_call.1} parent=31 // pred_check_branch
          %429 = sbr.rel (%p427) target = $region40
        $region39: #{tpu_custom_call.1} parent=31 // pred_region
          %s430 = smul.u32 2, %s27
          %432 = vsyncadd %s418, 0
          %s433 = smul.addr %s26, 2
          %s434 = sadd.s32 %s430, %s433
          %s435 = smul.addr %s434, 8
          %s436 = scalar_lea.hbm %s3, %s435
          %s437 = sshll.u32 %s421, 4
          %s438 = int_to_ptr.vmem [resolvable:$true] %s437
          %s439 = sshll.u32 %s436, 4
          %s440 = int_to_ptr.hbm [resolvable:$true] %s439
          %445 = dma.vmem_to_hbm [thread:$0]  %s438, 256, %s440, %s418, 128, 128, 8
        $region40: #{tpu_custom_call.1} parent=31 // pred_fallthru
          _
        // Predicated region
        $region41: #{tpu_custom_call.1} parent=31 // pred_check
          %p446 = pneg %p157
        $region42: #{tpu_custom_call.1} parent=31 // pred_check_branch
          %448 = sbr.rel (%p446) target = $region44
        $region43: #{tpu_custom_call.1} parent=31 // pred_region
          %450 = vsyncadd %s423, 0
          %s451 = sadd.s32 %s27, %s26
          %s452 = smul.addr %s451, 2
          %s453 = scalar_lea.hbm %s4, %s452
          %s455 = sshll.u32 %s426, 4
          %s456 = int_to_ptr.vmem [resolvable:$true] %s455
          %s457 = sshll.u32 %s453, 4
          %s458 = int_to_ptr.hbm [resolvable:$true] %s457
          %460 = dma.vmem_to_hbm [thread:$0]  %s456, 32, %s458, %s423
        $region44: #{tpu_custom_call.1} parent=31 // pred_fallthru
          _
      $region32: #{tpu_custom_call.1} parent=5 // pred_fallthru
        _
      %p461 = scmp.le.s32.totalorder 2, %s17
      // Predicated region
      $region45: #{tpu_custom_call.1} parent=5 // pred_check
        %p462 = pneg %p461
      $region46: #{tpu_custom_call.1} parent=5 // pred_check_branch
        %464 = sbr.rel (%p462) target = $region48
      $region47: #{tpu_custom_call.1} parent=5 // pred_region
        %s465 = ssub.s32 %s17, 2
        // Predicated region
        $region49: #{tpu_custom_call.1} parent=47 // pred_check
          %p466 = pneg %p135
        $region50: #{tpu_custom_call.1} parent=47 // pred_check_branch
          %468 = sbr.rel (%p466) target = $region52
        $region51: #{tpu_custom_call.1} parent=47 // pred_region
          %s469 = sand.u32 %s120, 1
          %s470 = scalar_lea.sflag [#allocation4], %s469
          %s471 = sand.u32 %s120, 1
          %s472 = smul.addr %s471, 16
          %s473 = scalar_lea.vmem [#allocation3], %s472
          %475 = dma.done %s470, 256
        $region52: #{tpu_custom_call.1} parent=47 // pred_fallthru
          _
        // Predicated region
        $region53: #{tpu_custom_call.1} parent=47 // pred_check
          %p476 = pneg %p163
        $region54: #{tpu_custom_call.1} parent=47 // pred_check_branch
          %478 = sbr.rel (%p476) target = $region56
        $region55: #{tpu_custom_call.1} parent=47 // pred_region
          %s479 = sand.u32 %s148, 1
          %s480 = scalar_lea.sflag [#allocation6], %s479
          %s481 = sand.u32 %s148, 1
          %s482 = smul.addr %s481, 2
          %s483 = scalar_lea.vmem [#allocation5], %s482
          %485 = dma.done %s480, 32
        $region56: #{tpu_custom_call.1} parent=47 // pred_fallthru
          _
      $region48: #{tpu_custom_call.1} parent=5 // pred_fallthru
        _
    $region6: #{tpu_custom_call.1} parent=1 // loop_footer
      %s21 = sadd.s32 1, %s17
    $region7: #{tpu_custom_call.1} parent=1 // loop_footer_branch
      %16 = sbr.rel target = $region3
    $region8: #{tpu_custom_call.1} parent=1 // loop_exit
      _
    %486 = vsyncpa [#allocation4], 1
    %s487 = scalar_lea.sflag [#allocation4], 1
    %488 = vsyncpa %s487, 1
    %489 = vsyncpa [#allocation6], 1
    %s490 = scalar_lea.sflag [#allocation6], 1
    %491 = vsyncpa %s490, 1

</llo_original>
